<compile_context>
chip_gen: v5e
topology: v5e:2x2
jax: 0.10.0
libtpu: 0.0.40
codegen_flags: <defaults>
</compile_context>

<pallas_src>
import functools

import jax
import jax.numpy as jnp
from jax.experimental import pallas as pl
from jax.experimental.pallas import tpu as pltpu

IN_FEATURES = 28 * 28   # 784
HIDDEN = 128
OUT = 2
OUT_PAD = 128           # lane-dense padded output width


def _round_up(x, m):
    return (x + m - 1) // m * m


def _multi_input_kernel(x1_ref, x2_ref,
                        w1_ref, b1_ref,
                        w2_ref, b2_ref,
                        w3_ref, b3_ref,
                        o_ref):
    # In-kernel f32 -> bf16 cast (VPU, hidden under the HBM-bound pipeline)
    # instead of a separate XLA convert that would round-trip HBM.
    x1 = x1_ref[...].astype(jnp.bfloat16)
    x2 = x2_ref[...].astype(jnp.bfloat16)

    # layer_1 / layer_2: (TB, 784)bf16 @ (784, 128)bf16 -> f32 acc, + bias.
    h1 = jnp.dot(x1, w1_ref[...], preferred_element_type=jnp.float32) + b1_ref[...]
    h2 = jnp.dot(x2, w2_ref[...], preferred_element_type=jnp.float32) + b2_ref[...]

    # layer_3 on the virtual concat:
    #   cat([h1, h2], 1) @ W3 + b3 == h1 @ W3[:128] + h2 @ W3[128:] + b3
    # (W3 lanes zero-padded 2 -> 128 for an unmasked, lane-dense store.)
    w3 = w3_ref[...]
    acc = (jnp.dot(h1.astype(jnp.bfloat16), w3[:HIDDEN, :],
                   preferred_element_type=jnp.float32)
           + jnp.dot(h2.astype(jnp.bfloat16), w3[HIDDEN:, :],
                     preferred_element_type=jnp.float32)
           + b3_ref[...])
    o_ref[...] = acc.astype(o_ref.dtype)   # bf16 store: half the writeback


def prepare_params(params):
    """One-time parameter prep (call once, outside the per-step forward).

    bf16 weights for layers 1/2/3, layer-3 weight/bias lane-padded 2 -> 128,
    biases reshaped to (1, N) f32 rows.
    """
    w3 = jnp.zeros((2 * HIDDEN, OUT_PAD), jnp.bfloat16)
    w3 = w3.at[:, :OUT].set(params["w3"].astype(jnp.bfloat16))
    b3 = jnp.zeros((1, OUT_PAD), jnp.float32)
    b3 = b3.at[:, :OUT].set(params["b3"].astype(jnp.float32))
    return {
        "w1": params["w1"].astype(jnp.bfloat16),
        "b1": params["b1"].reshape(1, HIDDEN).astype(jnp.float32),
        "w2": params["w2"].astype(jnp.bfloat16),
        "b2": params["b2"].reshape(1, HIDDEN).astype(jnp.float32),
        "w3": w3,
        "b3": b3,
    }


def _pick_tile(B, block_b):
    """Batch tile: multiple of 16, capped at block_b, and >=2 grid steps
    whenever B is large enough (so both v7x TensorCores get work)."""
    if B > block_b:
        return block_b
    half = _round_up(pl.cdiv(B, 2), 16)
    return half if half < B else B   # tiny B: one full-extent block


@functools.partial(jax.jit, static_argnames=("block_b",))
def multi_input_model(x1, x2, prepped, *, block_b=2048):
    """Pallas forward pass of MultiInputModel.

    x1, x2 : (B, 784) float32 (or bfloat16) inputs.
    prepped: output of prepare_params().
    Returns (B, 2) float32 logits.
    """
    B = x1.shape[0]
    tb = _pick_tile(B, block_b)
    nb = pl.cdiv(B, tb)   # partial last block handled by Pallas (no jnp.pad)

    tiled = lambda cols: pl.BlockSpec((tb, cols), lambda i: (i, 0))
    resident = lambda shape: pl.BlockSpec(shape, lambda i: (0, 0))

    out = pl.pallas_call(
        _multi_input_kernel,
        out_shape=jax.ShapeDtypeStruct((B, OUT_PAD), jnp.bfloat16),
        grid=(nb,),
        in_specs=[
            tiled(IN_FEATURES),               # x1  (TB, 784), f32 in HBM
            tiled(IN_FEATURES),               # x2  (TB, 784)
            resident((IN_FEATURES, HIDDEN)),  # w1  (VMEM-resident)
            resident((1, HIDDEN)),            # b1
            resident((IN_FEATURES, HIDDEN)),  # w2
            resident((1, HIDDEN)),            # b2
            resident((2 * HIDDEN, OUT_PAD)),  # w3 (lane-padded)
            resident((1, OUT_PAD)),           # b3 (lane-padded)
        ],
        out_specs=tiled(OUT_PAD),             # (TB, 128) lane-dense bf16 store
        compiler_params=pltpu.CompilerParams(
            dimension_semantics=("parallel",),
            vmem_limit_bytes=48 << 20),
    )(x1, x2,
      prepped["w1"], prepped["b1"],
      prepped["w2"], prepped["b2"],
      prepped["w3"], prepped["b3"])

    # Keep this slice: lanes 2..127 are zero padding, rows >= B (partial last
    # tile) are garbage.
    return out[:B, :OUT].astype(jnp.float32)


def init_params(key):
    """Deterministic parameter init (uniform, PyTorch-Linear-like scales)."""
    ks = jax.random.split(key, 6)

    def u(k, shape, fan_in):
        bound = 1.0 / jnp.sqrt(fan_in)
        return jax.random.uniform(k, shape, jnp.float32, -bound, bound)

    return {
        "w1": u(ks[0], (IN_FEATURES, HIDDEN), IN_FEATURES),
        "b1": u(ks[1], (HIDDEN,), IN_FEATURES),
        "w2": u(ks[2], (IN_FEATURES, HIDDEN), IN_FEATURES),
        "b2": u(ks[3], (HIDDEN,), IN_FEATURES),
        "w3": u(ks[4], (2 * HIDDEN, OUT), 2 * HIDDEN),
        "b3": u(ks[5], (OUT,), 2 * HIDDEN),
    }


def reference(x1, x2, params):
    """Pure-JAX reference with the same bf16 quantization / f32 accumulation
    (matches the kernel's numerics, incl. the final bf16 store)."""
    x1 = x1.astype(jnp.bfloat16)
    x2 = x2.astype(jnp.bfloat16)
    w1 = params["w1"].astype(jnp.bfloat16)
    w2 = params["w2"].astype(jnp.bfloat16)
    w3 = params["w3"].astype(jnp.bfloat16)
    h1 = jnp.dot(x1, w1, preferred_element_type=jnp.float32) + params["b1"]
    h2 = jnp.dot(x2, w2, preferred_element_type=jnp.float32) + params["b2"]
    h = jnp.concatenate([h1, h2], axis=1).astype(jnp.bfloat16)
    out = jnp.dot(h, w3, preferred_element_type=jnp.float32) + params["b3"]
    return out.astype(jnp.bfloat16).astype(jnp.float32)


if __name__ == "__main__":
    key = jax.random.PRNGKey(0)
    kx1, kx2, kp = jax.random.split(key, 3)

    B = 8
    x1 = jax.random.normal(kx1, (B, IN_FEATURES), jnp.float32)
    x2 = jax.random.normal(kx2, (B, IN_FEATURES), jnp.float32)
    params = init_params(kp)
    prepped = prepare_params(params)

    out = jax.block_until_ready(multi_input_model(x1, x2, prepped))
    ref = reference(x1, x2, params)

    assert out.shape == (B, OUT), out.shape
    assert jnp.allclose(out, ref, atol=1e-2, rtol=1e-2), (
        float(jnp.max(jnp.abs(out - ref))))
    print("KERNEL_OK")
</pallas_src>

<mosaic_0001>
module attributes {stable_mosaic.version = 11 : i64} {
  func.func @_multi_input_kernel(%arg0: i32, %arg1: memref<8x784xf32, #tpu.memory_space<vmem>>, %arg2: memref<8x784xf32, #tpu.memory_space<vmem>>, %arg3: memref<784x128xbf16, #tpu.memory_space<vmem>>, %arg4: memref<1x128xf32, #tpu.memory_space<vmem>>, %arg5: memref<784x128xbf16, #tpu.memory_space<vmem>>, %arg6: memref<1x128xf32, #tpu.memory_space<vmem>>, %arg7: memref<256x128xbf16, #tpu.memory_space<vmem>>, %arg8: memref<1x128xf32, #tpu.memory_space<vmem>>, %arg9: memref<8x128xbf16, #tpu.memory_space<vmem>>) attributes {dimension_semantics = [#tpu.dimension_semantics<parallel>], iteration_bounds = array<i64: 1>, scalar_prefetch = 0 : i64, scratch_operands = 0 : i64, tpu.core_type = #tpu.core_type<tc>, window_params = [{transform_indices = @transform_0, window_bounds = array<i64: 8, 784>}, {transform_indices = @transform_1, window_bounds = array<i64: 8, 784>}, {pipeline_mode = #tpu.pipeline_mode<synchronous>, transform_indices = @transform_2, window_bounds = array<i64: 784, 128>}, {pipeline_mode = #tpu.pipeline_mode<synchronous>, transform_indices = @transform_3, window_bounds = array<i64: 1, 128>}, {pipeline_mode = #tpu.pipeline_mode<synchronous>, transform_indices = @transform_4, window_bounds = array<i64: 784, 128>}, {pipeline_mode = #tpu.pipeline_mode<synchronous>, transform_indices = @transform_5, window_bounds = array<i64: 1, 128>}, {pipeline_mode = #tpu.pipeline_mode<synchronous>, transform_indices = @transform_6, window_bounds = array<i64: 256, 128>}, {pipeline_mode = #tpu.pipeline_mode<synchronous>, transform_indices = @transform_7, window_bounds = array<i64: 1, 128>}, {transform_indices = @transform_8, window_bounds = array<i64: 8, 128>}]} {
    %c0 = arith.constant 0 : index
    %c0_0 = arith.constant 0 : index
    %0 = vector.load %arg1[%c0, %c0_0] : memref<8x784xf32, #tpu.memory_space<vmem>>, vector<8x784xf32>
    %1 = arith.truncf %0 : vector<8x784xf32> to vector<8x784xbf16>
    %c0_1 = arith.constant 0 : index
    %c0_2 = arith.constant 0 : index
    %2 = vector.load %arg2[%c0_1, %c0_2] : memref<8x784xf32, #tpu.memory_space<vmem>>, vector<8x784xf32>
    %3 = arith.truncf %2 : vector<8x784xf32> to vector<8x784xbf16>
    %c0_3 = arith.constant 0 : index
    %c0_4 = arith.constant 0 : index
    %4 = vector.load %arg3[%c0_3, %c0_4] : memref<784x128xbf16, #tpu.memory_space<vmem>>, vector<784x128xbf16>
    %cst = arith.constant dense<0.000000e+00> : vector<8x128xf32>
    %5 = tpu.matmul %1, %4, %cst {dimension_numbers = #tpu.dot_dimension_numbers<[1], [0], [0], [1], [0, 0, 1, 1], [], []>} : vector<8x784xbf16>, vector<784x128xbf16>, vector<8x128xf32> -> vector<8x128xf32>
    %c0_5 = arith.constant 0 : index
    %c0_6 = arith.constant 0 : index
    %6 = vector.load %arg4[%c0_5, %c0_6] : memref<1x128xf32, #tpu.memory_space<vmem>>, vector<1x128xf32>
    %7 = vector.broadcast %6 : vector<1x128xf32> to vector<8x128xf32>
    %8 = arith.addf %5, %7 : vector<8x128xf32>
    %c0_7 = arith.constant 0 : index
    %c0_8 = arith.constant 0 : index
    %9 = vector.load %arg5[%c0_7, %c0_8] : memref<784x128xbf16, #tpu.memory_space<vmem>>, vector<784x128xbf16>
    %cst_9 = arith.constant dense<0.000000e+00> : vector<8x128xf32>
    %10 = tpu.matmul %3, %9, %cst_9 {dimension_numbers = #tpu.dot_dimension_numbers<[1], [0], [0], [1], [0, 0, 1, 1], [], []>} : vector<8x784xbf16>, vector<784x128xbf16>, vector<8x128xf32> -> vector<8x128xf32>
    %c0_10 = arith.constant 0 : index
    %c0_11 = arith.constant 0 : index
    %11 = vector.load %arg6[%c0_10, %c0_11] : memref<1x128xf32, #tpu.memory_space<vmem>>, vector<1x128xf32>
    %12 = vector.broadcast %11 : vector<1x128xf32> to vector<8x128xf32>
    %13 = arith.addf %10, %12 : vector<8x128xf32>
    %c0_12 = arith.constant 0 : index
    %c0_13 = arith.constant 0 : index
    %14 = vector.load %arg7[%c0_12, %c0_13] : memref<256x128xbf16, #tpu.memory_space<vmem>>, vector<256x128xbf16>
    %15 = arith.truncf %8 : vector<8x128xf32> to vector<8x128xbf16>
    %16 = vector.extract_strided_slice %14 {offsets = [0, 0], sizes = [128, 128], strides = [1, 1]} : vector<256x128xbf16> to vector<128x128xbf16>
    %cst_14 = arith.constant dense<0.000000e+00> : vector<8x128xf32>
    %17 = tpu.matmul %15, %16, %cst_14 {dimension_numbers = #tpu.dot_dimension_numbers<[1], [0], [0], [1], [0, 0, 1, 1], [], []>} : vector<8x128xbf16>, vector<128x128xbf16>, vector<8x128xf32> -> vector<8x128xf32>
    %18 = arith.truncf %13 : vector<8x128xf32> to vector<8x128xbf16>
    %19 = vector.extract_strided_slice %14 {offsets = [128, 0], sizes = [128, 128], strides = [1, 1]} : vector<256x128xbf16> to vector<128x128xbf16>
    %cst_15 = arith.constant dense<0.000000e+00> : vector<8x128xf32>
    %20 = tpu.matmul %18, %19, %cst_15 {dimension_numbers = #tpu.dot_dimension_numbers<[1], [0], [0], [1], [0, 0, 1, 1], [], []>} : vector<8x128xbf16>, vector<128x128xbf16>, vector<8x128xf32> -> vector<8x128xf32>
    %21 = arith.addf %17, %20 : vector<8x128xf32>
    %c0_16 = arith.constant 0 : index
    %c0_17 = arith.constant 0 : index
    %22 = vector.load %arg8[%c0_16, %c0_17] : memref<1x128xf32, #tpu.memory_space<vmem>>, vector<1x128xf32>
    %23 = vector.broadcast %22 : vector<1x128xf32> to vector<8x128xf32>
    %24 = arith.addf %21, %23 : vector<8x128xf32>
    %25 = arith.truncf %24 : vector<8x128xf32> to vector<8x128xbf16>
    %c0_18 = arith.constant 0 : index
    %c0_19 = arith.constant 0 : index
    %26 = vector.load %arg9[%c0_18, %c0_19] : memref<8x128xbf16, #tpu.memory_space<vmem>>, vector<8x128xbf16>
    tpu.vector_store %arg9[%c0_18, %c0_19], %25 {strides = array<i32>} : memref<8x128xbf16, #tpu.memory_space<vmem>>, vector<8x128xbf16>,
    return
  }
  func.func @transform_0(%arg0: i32) -> (i32, i32) {
    %c0_i32 = arith.constant 0 : i32
    %c0_i32_0 = arith.constant 0 : i32
    return %arg0, %c0_i32 : i32, i32
  }
  func.func @transform_1(%arg0: i32) -> (i32, i32) {
    %c0_i32 = arith.constant 0 : i32
    %c0_i32_0 = arith.constant 0 : i32
    return %arg0, %c0_i32 : i32, i32
  }
  func.func @transform_2(%arg0: i32) -> (i32, i32) {
    %c0_i32 = arith.constant 0 : i32
    %c0_i32_0 = arith.constant 0 : i32
    %c0_i32_1 = arith.constant 0 : i32
    return %c0_i32, %c0_i32_0 : i32, i32
  }
  func.func @transform_3(%arg0: i32) -> (i32, i32) {
    %c0_i32 = arith.constant 0 : i32
    %c0_i32_0 = arith.constant 0 : i32
    %c0_i32_1 = arith.constant 0 : i32
    return %c0_i32, %c0_i32_0 : i32, i32
  }
  func.func @transform_4(%arg0: i32) -> (i32, i32) {
    %c0_i32 = arith.constant 0 : i32
    %c0_i32_0 = arith.constant 0 : i32
    %c0_i32_1 = arith.constant 0 : i32
    return %c0_i32, %c0_i32_0 : i32, i32
  }
  func.func @transform_5(%arg0: i32) -> (i32, i32) {
    %c0_i32 = arith.constant 0 : i32
    %c0_i32_0 = arith.constant 0 : i32
    %c0_i32_1 = arith.constant 0 : i32
    return %c0_i32, %c0_i32_0 : i32, i32
  }
  func.func @transform_6(%arg0: i32) -> (i32, i32) {
    %c0_i32 = arith.constant 0 : i32
    %c0_i32_0 = arith.constant 0 : i32
    %c0_i32_1 = arith.constant 0 : i32
    return %c0_i32, %c0_i32_0 : i32, i32
  }
  func.func @transform_7(%arg0: i32) -> (i32, i32) {
    %c0_i32 = arith.constant 0 : i32
    %c0_i32_0 = arith.constant 0 : i32
    %c0_i32_1 = arith.constant 0 : i32
    return %c0_i32, %c0_i32_0 : i32, i32
  }
  func.func @transform_8(%arg0: i32) -> (i32, i32) {
    %c0_i32 = arith.constant 0 : i32
    %c0_i32_0 = arith.constant 0 : i32
    return %arg0, %c0_i32 : i32, i32
  }
}

</mosaic_0001>

<llo_original>
// kernel: multi_input_model.1
$region0: #{multi_input_model.1}
  #allocation0 [shape = 'u32[]', space=smem, size = 0x4, offset = 0x4, fixed_abs, tag = 'smem constant byte address 0x4 - core index']
  #allocation1 [shape = 'u32[72,128]{1,0:T(1,128)}', space=vmem, size = 0x9000, scoped, tag = 'internal scratch']
  %s0 = inlined_call_operand.hbm [shape: f32[8,784], index: 0, kind: input, shape index: {}]
  %s1 = inlined_call_operand.hbm [shape: f32[8,784], index: 1, kind: input, shape index: {}]
  %s2 = inlined_call_operand.hbm [shape: bf16[784,128], index: 2, kind: input, shape index: {}]
  %s3 = inlined_call_operand.vmem [shape: f32[1,128], index: 3, kind: input, shape index: {}]
  %s4 = inlined_call_operand.hbm [shape: bf16[784,128], index: 4, kind: input, shape index: {}]
  %s5 = inlined_call_operand.vmem [shape: f32[1,128], index: 5, kind: input, shape index: {}]
  %s6 = inlined_call_operand.hbm [shape: bf16[256,128], index: 6, kind: input, shape index: {}]
  %s7 = inlined_call_operand.vmem [shape: f32[1,128], index: 7, kind: input, shape index: {}]
  %s8 = inlined_call_operand.vmem [shape: bf16[8,128], index: 8, kind: output, shape index: {}]
  %s9 = sld [smem:[#allocation0]]
  $region62: #{multi_input_model.1} parent=0
    _
  %s11 = ssub.s32 1, %s9
  %s12 = scalar_select 0, %s11, %s9
  $region1: #{multi_input_model.1} parent=0
    #allocation2 [shape = 'u8[28672]{0}', space=vmem, size = 0x7000, scoped, tag = 'input window, operand 0, single buffered']
    #allocation3 [shape = 's32[1]{0}', space=sflag, size = 0x4, scoped, tag = 'scoped memory for multi_input_model.1']
    #allocation4 [shape = 'u8[28672]{0}', space=vmem, size = 0x7000, scoped, tag = 'input window, operand 1, single buffered']
    #allocation5 [shape = 's32[1]{0}', space=sflag, size = 0x4, scoped, tag = 'scoped memory for multi_input_model.1']
    #allocation6 [shape = 'u8[200704]{0}', space=vmem, size = 0x31000, scoped, tag = 'input window, operand 2, single buffered']
    #allocation7 [shape = 'u8[200704]{0}', space=vmem, size = 0x31000, scoped, tag = 'input window, operand 4, single buffered']
    #allocation8 [shape = 's32[1]{0}', space=sflag, size = 0x4, scoped, tag = 'scoped memory for multi_input_model.1']
    #allocation9 [shape = 'u8[65536]{0}', space=vmem, size = 0x10000, scoped, tag = 'input window, operand 6, single buffered']
    %13 = vsyncpa [#allocation3], 0
    %14 = vsyncpa [#allocation5], 0
    %15 = vsyncpa [#allocation8], 0
    // Predicated region
    $region2: #{multi_input_model.1} parent=1 // pred_check
      _
    $region3: #{multi_input_model.1} parent=1 // pred_check_branch
      %17 = sbr.rel (0) target = $region5
    $region4: #{multi_input_model.1} parent=1 // pred_region
      %19 = vsyncadd [#allocation3], 0
      %s21 = sshll.u32 %s0, 4
      %s22 = int_to_ptr.hbm [resolvable:$true] %s21
      %s23 = sshll.u32 [#allocation2], 4
      %s24 = int_to_ptr.vmem [resolvable:$true] %s23
      %26 = dma.hbm_to_vmem [thread:$0]  %s22, 896, %s24, [#allocation3]
    $region5: #{multi_input_model.1} parent=1 // pred_fallthru
      _
    // Predicated region
    $region6: #{multi_input_model.1} parent=1 // pred_check
      _
    $region7: #{multi_input_model.1} parent=1 // pred_check_branch
      %28 = sbr.rel (0) target = $region9
    $region8: #{multi_input_model.1} parent=1 // pred_region
      %30 = vsyncadd [#allocation5], 0
      %s32 = sshll.u32 %s1, 4
      %s33 = int_to_ptr.hbm [resolvable:$true] %s32
      %s34 = sshll.u32 [#allocation4], 4
      %s35 = int_to_ptr.vmem [resolvable:$true] %s34
      %37 = dma.hbm_to_vmem [thread:$0]  %s33, 896, %s35, [#allocation5]
    $region9: #{multi_input_model.1} parent=1 // pred_fallthru
      _
    // Predicated region
    $region10: #{multi_input_model.1} parent=1 // pred_check
      _
    $region11: #{multi_input_model.1} parent=1 // pred_check_branch
      %39 = sbr.rel (0) target = $region13
    $region12: #{multi_input_model.1} parent=1 // pred_region
      %41 = vsyncadd [#allocation5], 0
      %s42 = sshll.u32 %s2, 4
      %s43 = int_to_ptr.hbm [resolvable:$true] %s42
      %s44 = sshll.u32 [#allocation6], 4
      %s45 = int_to_ptr.vmem [resolvable:$true] %s44
      %50 = dma.hbm_to_vmem [thread:$0]  %s43, 6272, %s45, [#allocation5], 64, 64, 4
    $region13: #{multi_input_model.1} parent=1 // pred_fallthru
      _
    // Predicated region
    $region14: #{multi_input_model.1} parent=1 // pred_check
      _
    $region15: #{multi_input_model.1} parent=1 // pred_check_branch
      %52 = sbr.rel (0) target = $region17
    $region16: #{multi_input_model.1} parent=1 // pred_region
      _
    $region17: #{multi_input_model.1} parent=1 // pred_fallthru
      _
    // Predicated region
    $region18: #{multi_input_model.1} parent=1 // pred_check
      _
    $region19: #{multi_input_model.1} parent=1 // pred_check_branch
      %54 = sbr.rel (0) target = $region21
    $region20: #{multi_input_model.1} parent=1 // pred_region
      %56 = vsyncadd [#allocation8], 0
      %s57 = sshll.u32 %s4, 4
      %s58 = int_to_ptr.hbm [resolvable:$true] %s57
      %s59 = sshll.u32 [#allocation7], 4
      %s60 = int_to_ptr.vmem [resolvable:$true] %s59
      %65 = dma.hbm_to_vmem [thread:$0]  %s58, 6272, %s60, [#allocation8], 64, 64, 4
    $region21: #{multi_input_model.1} parent=1 // pred_fallthru
      _
    // Predicated region
    $region22: #{multi_input_model.1} parent=1 // pred_check
      _
    $region23: #{multi_input_model.1} parent=1 // pred_check_branch
      %67 = sbr.rel (0) target = $region25
    $region24: #{multi_input_model.1} parent=1 // pred_region
      _
    $region25: #{multi_input_model.1} parent=1 // pred_fallthru
      _
    // Predicated region
    $region26: #{multi_input_model.1} parent=1 // pred_check
      _
    $region27: #{multi_input_model.1} parent=1 // pred_check_branch
      %69 = sbr.rel (0) target = $region29
    $region28: #{multi_input_model.1} parent=1 // pred_region
      %71 = vsyncadd [#allocation8], 0
      %s72 = sshll.u32 %s6, 4
      %s73 = int_to_ptr.hbm [resolvable:$true] %s72
      %s74 = sshll.u32 [#allocation9], 4
      %s75 = int_to_ptr.vmem [resolvable:$true] %s74
      %80 = dma.hbm_to_vmem [thread:$0]  %s73, 2048, %s75, [#allocation8], 64, 64, 4
    $region29: #{multi_input_model.1} parent=1 // pred_fallthru
      _
    // Predicated region
    $region30: #{multi_input_model.1} parent=1 // pred_check
      _
    $region31: #{multi_input_model.1} parent=1 // pred_check_branch
      %82 = sbr.rel (0) target = $region33
    $region32: #{multi_input_model.1} parent=1 // pred_region
      _
    $region33: #{multi_input_model.1} parent=1 // pred_fallthru
      _
    // Predicated region
    $region34: #{multi_input_model.1} parent=1 // pred_check
      _
    $region35: #{multi_input_model.1} parent=1 // pred_check_branch
      %84 = sbr.rel (0) target = $region37
    $region36: #{multi_input_model.1} parent=1 // pred_region
      %86 = dma.done [#allocation3], 896
    $region37: #{multi_input_model.1} parent=1 // pred_fallthru
      _
    // Predicated region
    $region38: #{multi_input_model.1} parent=1 // pred_check
      _
    $region39: #{multi_input_model.1} parent=1 // pred_check_branch
      %88 = sbr.rel (0) target = $region41
    $region40: #{multi_input_model.1} parent=1 // pred_region
      %90 = dma.done [#allocation5], 896
    $region41: #{multi_input_model.1} parent=1 // pred_fallthru
      _
    // Predicated region
    $region42: #{multi_input_model.1} parent=1 // pred_check
      _
    $region43: #{multi_input_model.1} parent=1 // pred_check_branch
      %92 = sbr.rel (0) target = $region45
    $region44: #{multi_input_model.1} parent=1 // pred_region
      %94 = dma.done [#allocation5], 6272
    $region45: #{multi_input_model.1} parent=1 // pred_fallthru
      _
    // Predicated region
    $region46: #{multi_input_model.1} parent=1 // pred_check
      _
    $region47: #{multi_input_model.1} parent=1 // pred_check_branch
      %96 = sbr.rel (0) target = $region49
    $region48: #{multi_input_model.1} parent=1 // pred_region
      %98 = dma.done [#allocation8], 6272
    $region49: #{multi_input_model.1} parent=1 // pred_fallthru
      _
    // Predicated region
    $region50: #{multi_input_model.1} parent=1 // pred_check
      _
    $region51: #{multi_input_model.1} parent=1 // pred_check_branch
      %100 = sbr.rel (0) target = $region53
    $region52: #{multi_input_model.1} parent=1 // pred_region
      %102 = dma.done [#allocation8], 2048
    $region53: #{multi_input_model.1} parent=1 // pred_fallthru
      _
    %v104 = vld [vmem:[#allocation2] sm:$0xff]
    %v105 = vld [vmem:[#allocation2 + $0x8] sm:$0xff]
    %v106 = vld [vmem:[#allocation2 + $0x10] sm:$0xff]
    %v107 = vld [vmem:[#allocation2 + $0x18] sm:$0xff]
    %v108 = vld [vmem:[#allocation2 + $0x20] sm:$0xff]
    %v109 = vld [vmem:[#allocation2 + $0x28] sm:$0xff]
    %v110 = vld [vmem:[#allocation2 + $0x30] sm:$0xff]
    %v111 = vpack.c.bf16 %v104, %v104
    %v112 = vpack.c.bf16 %v105, %v105
    %v113 = vpack.c.bf16 %v106, %v106
    %v114 = vpack.c.bf16 %v107, %v107
    %v115 = vpack.c.bf16 %v108, %v108
    %v116 = vpack.c.bf16 %v109, %v109
    %v117 = vpack.c.bf16 %v110, %v110
    %v118 = vld [vmem:[#allocation4] sm:$0xff]
    %v119 = vld [vmem:[#allocation4 + $0x8] sm:$0xff]
    %v120 = vld [vmem:[#allocation4 + $0x10] sm:$0xff]
    %v121 = vld [vmem:[#allocation4 + $0x18] sm:$0xff]
    %v122 = vld [vmem:[#allocation4 + $0x20] sm:$0xff]
    %v123 = vld [vmem:[#allocation4 + $0x28] sm:$0xff]
    %v124 = vld [vmem:[#allocation4 + $0x30] sm:$0xff]
    %v125 = vpack.c.bf16 %v118, %v118
    %v126 = vpack.c.bf16 %v119, %v119
    %v127 = vpack.c.bf16 %v120, %v120
    %v128 = vpack.c.bf16 %v121, %v121
    %v129 = vpack.c.bf16 %v122, %v122
    %v130 = vpack.c.bf16 %v123, %v123
    %v131 = vpack.c.bf16 %v124, %v124
    %v132 = vld [vmem:[#allocation6] sm:$0xf]
    %v133 = vld [vmem:[#allocation6 + $0x4] sm:$0xf]
    %v134 = vld [vmem:[#allocation6 + $0x8] sm:$0xf]
    %v135 = vld [vmem:[#allocation6 + $0xc] sm:$0xf]
    %v136 = vld [vmem:[#allocation6 + $0x10] sm:$0xf]
    %v137 = vld [vmem:[#allocation6 + $0x14] sm:$0xf]
    %v138 = vld [vmem:[#allocation6 + $0x18] sm:$0xf]
    %v139 = vld [vmem:[#allocation6 + $0x1c] sm:$0xf]
    %v140 = vld [vmem:[#allocation6 + $0x20] sm:$0xf]
    %v141 = vld [vmem:[#allocation6 + $0x24] sm:$0xf]
    %v142 = vld [vmem:[#allocation6 + $0x28] sm:$0xf]
    %v143 = vld [vmem:[#allocation6 + $0x2c] sm:$0xf]
    %v144 = vld [vmem:[#allocation6 + $0x30] sm:$0xf]
    %v145 = vld [vmem:[#allocation6 + $0x34] sm:$0xf]
    %v146 = vld [vmem:[#allocation6 + $0x38] sm:$0xf]
    %v147 = vld [vmem:[#allocation6 + $0x3c] sm:$0xf]
    %v148 = vld [vmem:[#allocation6 + $0x40] sm:$0xf]
    %v149 = vld [vmem:[#allocation6 + $0x44] sm:$0xf]
    %v150 = vld [vmem:[#allocation6 + $0x48] sm:$0xf]
    %v151 = vld [vmem:[#allocation6 + $0x4c] sm:$0xf]
    %v152 = vld [vmem:[#allocation6 + $0x50] sm:$0xf]
    %v153 = vld [vmem:[#allocation6 + $0x54] sm:$0xf]
    %v154 = vld [vmem:[#allocation6 + $0x58] sm:$0xf]
    %v155 = vld [vmem:[#allocation6 + $0x5c] sm:$0xf]
    %v156 = vld [vmem:[#allocation6 + $0x60] sm:$0xf]
    %v157 = vld [vmem:[#allocation6 + $0x64] sm:$0xf]
    %v158 = vld [vmem:[#allocation6 + $0x68] sm:$0xf]
    %v159 = vld [vmem:[#allocation6 + $0x6c] sm:$0xf]
    %v160 = vld [vmem:[#allocation6 + $0x70] sm:$0xf]
    %v161 = vld [vmem:[#allocation6 + $0x74] sm:$0xf]
    %v162 = vld [vmem:[#allocation6 + $0x78] sm:$0xf]
    %v163 = vld [vmem:[#allocation6 + $0x7c] sm:$0xf]
    %v164 = vld [vmem:[#allocation6 + $0x80] sm:$0xf]
    %v165 = vld [vmem:[#allocation6 + $0x84] sm:$0xf]
    %v166 = vld [vmem:[#allocation6 + $0x88] sm:$0xf]
    %v167 = vld [vmem:[#allocation6 + $0x8c] sm:$0xf]
    %v168 = vld [vmem:[#allocation6 + $0x90] sm:$0xf]
    %v169 = vld [vmem:[#allocation6 + $0x94] sm:$0xf]
    %v170 = vld [vmem:[#allocation6 + $0x98] sm:$0xf]
    %v171 = vld [vmem:[#allocation6 + $0x9c] sm:$0xf]
    %v172 = vld [vmem:[#allocation6 + $0xa0] sm:$0xf]
    %v173 = vld [vmem:[#allocation6 + $0xa4] sm:$0xf]
    %v174 = vld [vmem:[#allocation6 + $0xa8] sm:$0xf]
    %v175 = vld [vmem:[#allocation6 + $0xac] sm:$0xf]
    %v176 = vld [vmem:[#allocation6 + $0xb0] sm:$0xf]
    %v177 = vld [vmem:[#allocation6 + $0xb4] sm:$0xf]
    %v178 = vld [vmem:[#allocation6 + $0xb8] sm:$0xf]
    %v179 = vld [vmem:[#allocation6 + $0xbc] sm:$0xf]
    %v180 = vld [vmem:[#allocation6 + $0xc0] sm:$0xf]
    %v181 = vld [vmem:[#allocation6 + $0xc4] sm:$0xf]
    %v182 = vld [vmem:[#allocation6 + $0xc8] sm:$0xf]
    %v183 = vld [vmem:[#allocation6 + $0xcc] sm:$0xf]
    %v184 = vld [vmem:[#allocation6 + $0xd0] sm:$0xf]
    %v185 = vld [vmem:[#allocation6 + $0xd4] sm:$0xf]
    %v186 = vld [vmem:[#allocation6 + $0xd8] sm:$0xf]
    %v187 = vld [vmem:[#allocation6 + $0xdc] sm:$0xf]
    %v188 = vld [vmem:[#allocation6 + $0xe0] sm:$0xf]
    %v189 = vld [vmem:[#allocation6 + $0xe4] sm:$0xf]
    %v190 = vld [vmem:[#allocation6 + $0xe8] sm:$0xf]
    %v191 = vld [vmem:[#allocation6 + $0xec] sm:$0xf]
    %v192 = vld [vmem:[#allocation6 + $0xf0] sm:$0xf]
    %v193 = vld [vmem:[#allocation6 + $0xf4] sm:$0xf]
    %v194 = vld [vmem:[#allocation6 + $0xf8] sm:$0xf]
    %v195 = vld [vmem:[#allocation6 + $0xfc] sm:$0xf]
    %v196 = vld [vmem:[#allocation6 + $0x100] sm:$0xf]
    %v197 = vld [vmem:[#allocation6 + $0x104] sm:$0xf]
    %v198 = vld [vmem:[#allocation6 + $0x108] sm:$0xf]
    %v199 = vld [vmem:[#allocation6 + $0x10c] sm:$0xf]
    %v200 = vld [vmem:[#allocation6 + $0x110] sm:$0xf]
    %v201 = vld [vmem:[#allocation6 + $0x114] sm:$0xf]
    %v202 = vld [vmem:[#allocation6 + $0x118] sm:$0xf]
    %v203 = vld [vmem:[#allocation6 + $0x11c] sm:$0xf]
    %v204 = vld [vmem:[#allocation6 + $0x120] sm:$0xf]
    %v205 = vld [vmem:[#allocation6 + $0x124] sm:$0xf]
    %v206 = vld [vmem:[#allocation6 + $0x128] sm:$0xf]
    %v207 = vld [vmem:[#allocation6 + $0x12c] sm:$0xf]
    %v208 = vld [vmem:[#allocation6 + $0x130] sm:$0xf]
    %v209 = vld [vmem:[#allocation6 + $0x134] sm:$0xf]
    %v210 = vld [vmem:[#allocation6 + $0x138] sm:$0xf]
    %v211 = vld [vmem:[#allocation6 + $0x13c] sm:$0xf]
    %v212 = vld [vmem:[#allocation6 + $0x140] sm:$0xf]
    %v213 = vld [vmem:[#allocation6 + $0x144] sm:$0xf]
    %v214 = vld [vmem:[#allocation6 + $0x148] sm:$0xf]
    %v215 = vld [vmem:[#allocation6 + $0x14c] sm:$0xf]
    %v216 = vld [vmem:[#allocation6 + $0x150] sm:$0xf]
    %v217 = vld [vmem:[#allocation6 + $0x154] sm:$0xf]
    %v218 = vld [vmem:[#allocation6 + $0x158] sm:$0xf]
    %v219 = vld [vmem:[#allocation6 + $0x15c] sm:$0xf]
    %v220 = vld [vmem:[#allocation6 + $0x160] sm:$0xf]
    %v221 = vld [vmem:[#allocation6 + $0x164] sm:$0xf]
    %v222 = vld [vmem:[#allocation6 + $0x168] sm:$0xf]
    %v223 = vld [vmem:[#allocation6 + $0x16c] sm:$0xf]
    %v224 = vld [vmem:[#allocation6 + $0x170] sm:$0xf]
    %v225 = vld [vmem:[#allocation6 + $0x174] sm:$0xf]
    %v226 = vld [vmem:[#allocation6 + $0x178] sm:$0xf]
    %v227 = vld [vmem:[#allocation6 + $0x17c] sm:$0xf]
    %v228 = vld [vmem:[#allocation6 + $0x180] sm:$0xf]
    %v229 = vld [vmem:[#allocation6 + $0x184] sm:$0xf]
    %v230 = vld [vmem:[%s3] sm:$0x1]
    %v232 = vperm.slane %v230, 0
    %v332 = vunpack.c.l.b16 %v132
    %v333 = vunpack.c.l.b16 %v133
    %v334 = vunpack.c.l.b16 %v134
    %v335 = vunpack.c.l.b16 %v135
    %v336 = vunpack.c.l.b16 %v136
    %v337 = vunpack.c.l.b16 %v137
    %v338 = vunpack.c.l.b16 %v138
    %v339 = vunpack.c.l.b16 %v139
    %v340 = vunpack.c.l.b16 %v140
    %v341 = vunpack.c.l.b16 %v141
    %v342 = vunpack.c.l.b16 %v142
    %v343 = vunpack.c.l.b16 %v143
    %v344 = vunpack.c.l.b16 %v144
    %v345 = vunpack.c.l.b16 %v145
    %v346 = vunpack.c.l.b16 %v146
    %v347 = vunpack.c.l.b16 %v147
    %v348 = vunpack.c.l.b16 %v148
    %v349 = vunpack.c.l.b16 %v149
    %v350 = vunpack.c.l.b16 %v150
    %v351 = vunpack.c.l.b16 %v151
    %v352 = vunpack.c.l.b16 %v152
    %v353 = vunpack.c.l.b16 %v153
    %v354 = vunpack.c.l.b16 %v154
    %v355 = vunpack.c.l.b16 %v155
    %v356 = vunpack.c.l.b16 %v156
    %v357 = vunpack.c.l.b16 %v157
    %v358 = vunpack.c.l.b16 %v158
    %v359 = vunpack.c.l.b16 %v159
    %v360 = vunpack.c.l.b16 %v160
    %v361 = vunpack.c.l.b16 %v161
    %v362 = vunpack.c.l.b16 %v162
    %v363 = vunpack.c.l.b16 %v163
    %v364 = vunpack.c.l.b16 %v164
    %v365 = vunpack.c.l.b16 %v165
    %v366 = vunpack.c.l.b16 %v166
    %v367 = vunpack.c.l.b16 %v167
    %v368 = vunpack.c.l.b16 %v168
    %v369 = vunpack.c.l.b16 %v169
    %v370 = vunpack.c.l.b16 %v170
    %v371 = vunpack.c.l.b16 %v171
    %v372 = vunpack.c.l.b16 %v172
    %v373 = vunpack.c.l.b16 %v173
    %v374 = vunpack.c.l.b16 %v174
    %v375 = vunpack.c.l.b16 %v175
    %v376 = vunpack.c.l.b16 %v176
    %v377 = vunpack.c.l.b16 %v177
    %v378 = vunpack.c.l.b16 %v178
    %v379 = vunpack.c.l.b16 %v179
    %v380 = vunpack.c.l.b16 %v180
    %v381 = vunpack.c.l.b16 %v181
    %v382 = vunpack.c.l.b16 %v182
    %v383 = vunpack.c.l.b16 %v183
    %v384 = vunpack.c.l.b16 %v184
    %v385 = vunpack.c.l.b16 %v185
    %v386 = vunpack.c.l.b16 %v186
    %v387 = vunpack.c.l.b16 %v187
    %v388 = vunpack.c.l.b16 %v188
    %v389 = vunpack.c.l.b16 %v189
    %v390 = vunpack.c.l.b16 %v190
    %v391 = vunpack.c.l.b16 %v191
    %v392 = vunpack.c.l.b16 %v192
    %v393 = vunpack.c.l.b16 %v193
    %v394 = vunpack.c.l.b16 %v194
    %v395 = vunpack.c.l.b16 %v195
    %v396 = vunpack.c.l.b16 %v196
    %v397 = vunpack.c.l.b16 %v197
    %v398 = vunpack.c.l.b16 %v198
    %v399 = vunpack.c.l.b16 %v199
    %v400 = vunpack.c.l.b16 %v200
    %v401 = vunpack.c.l.b16 %v201
    %v402 = vunpack.c.l.b16 %v202
    %v403 = vunpack.c.l.b16 %v203
    %v404 = vunpack.c.l.b16 %v204
    %v405 = vunpack.c.l.b16 %v205
    %v406 = vunpack.c.l.b16 %v206
    %v407 = vunpack.c.l.b16 %v207
    %v408 = vunpack.c.l.b16 %v208
    %v409 = vunpack.c.l.b16 %v209
    %v410 = vunpack.c.l.b16 %v210
    %v411 = vunpack.c.l.b16 %v211
    %v412 = vunpack.c.l.b16 %v212
    %v413 = vunpack.c.l.b16 %v213
    %v414 = vunpack.c.l.b16 %v214
    %v415 = vunpack.c.l.b16 %v215
    %v416 = vunpack.c.l.b16 %v216
    %v417 = vunpack.c.l.b16 %v217
    %v418 = vunpack.c.l.b16 %v218
    %v419 = vunpack.c.l.b16 %v219
    %v420 = vunpack.c.l.b16 %v220
    %v421 = vunpack.c.l.b16 %v221
    %v422 = vunpack.c.l.b16 %v222
    %v423 = vunpack.c.l.b16 %v223
    %v424 = vunpack.c.l.b16 %v224
    %v425 = vunpack.c.l.b16 %v225
    %v426 = vunpack.c.l.b16 %v226
    %v427 = vunpack.c.l.b16 %v227
    %v428 = vunpack.c.l.b16 %v228
    %v429 = vunpack.c.l.b16 %v229
    %v430 = vpack.c.b16 %v333, %v332
    %v431 = vpack.c.b16 %v335, %v334
    %v432 = vpack.c.b16 %v337, %v336
    %v433 = vpack.c.b16 %v339, %v338
    %v434 = vpack.c.b16 %v341, %v340
    %v435 = vpack.c.b16 %v343, %v342
    %v436 = vpack.c.b16 %v345, %v344
    %v437 = vpack.c.b16 %v347, %v346
    %v438 = vpack.c.b16 %v349, %v348
    %v439 = vpack.c.b16 %v351, %v350
    %v440 = vpack.c.b16 %v353, %v352
    %v441 = vpack.c.b16 %v355, %v354
    %v442 = vpack.c.b16 %v357, %v356
    %v443 = vpack.c.b16 %v359, %v358
    %v444 = vpack.c.b16 %v361, %v360
    %v445 = vpack.c.b16 %v363, %v362
    %v446 = vpack.c.b16 %v365, %v364
    %v447 = vpack.c.b16 %v367, %v366
    %v448 = vpack.c.b16 %v369, %v368
    %v449 = vpack.c.b16 %v371, %v370
    %v450 = vpack.c.b16 %v373, %v372
    %v451 = vpack.c.b16 %v375, %v374
    %v452 = vpack.c.b16 %v377, %v376
    %v453 = vpack.c.b16 %v379, %v378
    %v454 = vpack.c.b16 %v381, %v380
    %v455 = vpack.c.b16 %v383, %v382
    %v456 = vpack.c.b16 %v385, %v384
    %v457 = vpack.c.b16 %v387, %v386
    %v458 = vpack.c.b16 %v389, %v388
    %v459 = vpack.c.b16 %v391, %v390
    %v460 = vpack.c.b16 %v393, %v392
    %v461 = vpack.c.b16 %v395, %v394
    %v462 = vpack.c.b16 %v397, %v396
    %v463 = vpack.c.b16 %v399, %v398
    %v464 = vpack.c.b16 %v401, %v400
    %v465 = vpack.c.b16 %v403, %v402
    %v466 = vpack.c.b16 %v405, %v404
    %v467 = vpack.c.b16 %v407, %v406
    %v468 = vpack.c.b16 %v409, %v408
    %v469 = vpack.c.b16 %v411, %v410
    %v470 = vpack.c.b16 %v413, %v412
    %v471 = vpack.c.b16 %v415, %v414
    %v472 = vpack.c.b16 %v417, %v416
    %v473 = vpack.c.b16 %v419, %v418
    %v474 = vpack.c.b16 %v421, %v420
    %v475 = vpack.c.b16 %v423, %v422
    %v476 = vpack.c.b16 %v425, %v424
    %v477 = vpack.c.b16 %v427, %v426
    %v478 = vpack.c.b16 %v429, %v428
    %vm528 = vcmask 130048
    %v530 = vsel %vm528, %v117, 0
    %532 = vmatpush.bf16.msra.mxu0 %v437
    %533 = vmatpush.bf16.msra.mxu0 %v436
    %534 = vmatpush.bf16.msra.mxu0 %v435
    %535 = vmatpush.bf16.msra.mxu0 %v434
    %536 = vmatpush.bf16.msra.mxu0 %v433
    %537 = vmatpush.bf16.msra.mxu0 %v432
    %538 = vmatpush.bf16.msra.mxu0 %v431
    %539 = vmatpush.bf16.msra.mxu0 %v430
    %540 = vmatmul.bf16.gmra.mxu0 %v111
    %v541 = vpop.f32.mrf.mxu0
    %v542 = vadd.f32 %v232, %v541
    %v543 = vpop.f32.mrf.mxu0
    %544 = vdwg.mxu0
    %545 = vmatpush.bf16.msra.mxu0 %v445
    %546 = vmatpush.bf16.msra.mxu0 %v444
    %547 = vmatpush.bf16.msra.mxu0 %v443
    %548 = vmatpush.bf16.msra.mxu0 %v442
    %549 = vmatpush.bf16.msra.mxu0 %v441
    %550 = vmatpush.bf16.msra.mxu0 %v440
    %551 = vmatpush.bf16.msra.mxu0 %v439
    %552 = vmatpush.bf16.msra.mxu0 %v438
    %553 = vmatmul.bf16.gmra.mxu0 %v112
    %v554 = vpop.f32.mrf.mxu0
    %v555 = vadd.f32 %v542, %v554
    %v556 = vpop.f32.mrf.mxu0
    %557 = vdwg.mxu0
    %558 = vmatpush.bf16.msra.mxu0 %v453
    %559 = vmatpush.bf16.msra.mxu0 %v452
    %560 = vmatpush.bf16.msra.mxu0 %v451
    %561 = vmatpush.bf16.msra.mxu0 %v450
    %562 = vmatpush.bf16.msra.mxu0 %v449
    %563 = vmatpush.bf16.msra.mxu0 %v448
    %564 = vmatpush.bf16.msra.mxu0 %v447
    %565 = vmatpush.bf16.msra.mxu0 %v446
    %566 = vmatmul.bf16.gmra.mxu0 %v113
    %v567 = vpop.f32.mrf.mxu0
    %v568 = vadd.f32 %v555, %v567
    %v569 = vpop.f32.mrf.mxu0
    %570 = vdwg.mxu0
    %571 = vmatpush.bf16.msra.mxu0 %v461
    %572 = vmatpush.bf16.msra.mxu0 %v460
    %573 = vmatpush.bf16.msra.mxu0 %v459
    %574 = vmatpush.bf16.msra.mxu0 %v458
    %575 = vmatpush.bf16.msra.mxu0 %v457
    %576 = vmatpush.bf16.msra.mxu0 %v456
    %577 = vmatpush.bf16.msra.mxu0 %v455
    %578 = vmatpush.bf16.msra.mxu0 %v454
    %579 = vmatmul.bf16.gmra.mxu0 %v114
    %v580 = vpop.f32.mrf.mxu0
    %v581 = vadd.f32 %v568, %v580
    %v582 = vpop.f32.mrf.mxu0
    %583 = vdwg.mxu0
    %584 = vmatpush.bf16.msra.mxu0 %v469
    %585 = vmatpush.bf16.msra.mxu0 %v468
    %586 = vmatpush.bf16.msra.mxu0 %v467
    %587 = vmatpush.bf16.msra.mxu0 %v466
    %588 = vmatpush.bf16.msra.mxu0 %v465
    %589 = vmatpush.bf16.msra.mxu0 %v464
    %590 = vmatpush.bf16.msra.mxu0 %v463
    %591 = vmatpush.bf16.msra.mxu0 %v462
    %592 = vmatmul.bf16.gmra.mxu0 %v115
    %v593 = vpop.f32.mrf.mxu0
    %v594 = vadd.f32 %v581, %v593
    %v595 = vpop.f32.mrf.mxu0
    %596 = vdwg.mxu0
    %597 = vmatpush.bf16.msra.mxu0 %v477
    %598 = vmatpush.bf16.msra.mxu0 %v476
    %599 = vmatpush.bf16.msra.mxu0 %v475
    %600 = vmatpush.bf16.msra.mxu0 %v474
    %601 = vmatpush.bf16.msra.mxu0 %v473
    %602 = vmatpush.bf16.msra.mxu0 %v472
    %603 = vmatpush.bf16.msra.mxu0 %v471
    %604 = vmatpush.bf16.msra.mxu0 %v470
    %605 = vmatmul.bf16.gmra.mxu0 %v116
    %v606 = vpop.f32.mrf.mxu0
    %v607 = vadd.f32 %v594, %v606
    %v608 = vpop.f32.mrf.mxu0
    %609 = vdwg.mxu0
    %610 = vmatpush.bf16.msra.mxu0 0
    %611 = vmatpush.bf16.msra.mxu0 0
    %612 = vmatpush.bf16.msra.mxu0 0
    %613 = vmatpush.bf16.msra.mxu0 0
    %614 = vmatpush.bf16.msra.mxu0 0
    %615 = vmatpush.bf16.msra.mxu0 0
    %616 = vmatpush.bf16.msra.mxu0 0
    %617 = vmatpush.bf16.msra.mxu0 %v478
    %618 = vmatmul.bf16.gmra.mxu0 %v530
    %v619 = vpop.f32.mrf.mxu0
    %v620 = vadd.f32 %v607, %v619
    %v621 = vpop.f32.mrf.mxu0
    %622 = vdwg.mxu0
    %v623 = vld [vmem:[#allocation7] sm:$0xf]
    %v624 = vld [vmem:[#allocation7 + $0x4] sm:$0xf]
    %v625 = vld [vmem:[#allocation7 + $0x8] sm:$0xf]
    %v626 = vld [vmem:[#allocation7 + $0xc] sm:$0xf]
    %v627 = vld [vmem:[#allocation7 + $0x10] sm:$0xf]
    %v628 = vld [vmem:[#allocation7 + $0x14] sm:$0xf]
    %v629 = vld [vmem:[#allocation7 + $0x18] sm:$0xf]
    %v630 = vld [vmem:[#allocation7 + $0x1c] sm:$0xf]
    %v631 = vld [vmem:[#allocation7 + $0x20] sm:$0xf]
    %v632 = vld [vmem:[#allocation7 + $0x24] sm:$0xf]
    %v633 = vld [vmem:[#allocation7 + $0x28] sm:$0xf]
    %v634 = vld [vmem:[#allocation7 + $0x2c] sm:$0xf]
    %v635 = vld [vmem:[#allocation7 + $0x30] sm:$0xf]
    %v636 = vld [vmem:[#allocation7 + $0x34] sm:$0xf]
    %v637 = vld [vmem:[#allocation7 + $0x38] sm:$0xf]
    %v638 = vld [vmem:[#allocation7 + $0x3c] sm:$0xf]
    %v639 = vld [vmem:[#allocation7 + $0x40] sm:$0xf]
    %v640 = vld [vmem:[#allocation7 + $0x44] sm:$0xf]
    %v641 = vld [vmem:[#allocation7 + $0x48] sm:$0xf]
    %v642 = vld [vmem:[#allocation7 + $0x4c] sm:$0xf]
    %v643 = vld [vmem:[#allocation7 + $0x50] sm:$0xf]
    %v644 = vld [vmem:[#allocation7 + $0x54] sm:$0xf]
    %v645 = vld [vmem:[#allocation7 + $0x58] sm:$0xf]
    %v646 = vld [vmem:[#allocation7 + $0x5c] sm:$0xf]
    %v647 = vld [vmem:[#allocation7 + $0x60] sm:$0xf]
    %v648 = vld [vmem:[#allocation7 + $0x64] sm:$0xf]
    %v649 = vld [vmem:[#allocation7 + $0x68] sm:$0xf]
    %v650 = vld [vmem:[#allocation7 + $0x6c] sm:$0xf]
    %v651 = vld [vmem:[#allocation7 + $0x70] sm:$0xf]
    %v652 = vld [vmem:[#allocation7 + $0x74] sm:$0xf]
    %v653 = vld [vmem:[#allocation7 + $0x78] sm:$0xf]
    %v654 = vld [vmem:[#allocation7 + $0x7c] sm:$0xf]
    %v655 = vld [vmem:[#allocation7 + $0x80] sm:$0xf]
    %v656 = vld [vmem:[#allocation7 + $0x84] sm:$0xf]
    %v657 = vld [vmem:[#allocation7 + $0x88] sm:$0xf]
    %v658 = vld [vmem:[#allocation7 + $0x8c] sm:$0xf]
    %v659 = vld [vmem:[#allocation7 + $0x90] sm:$0xf]
    %v660 = vld [vmem:[#allocation7 + $0x94] sm:$0xf]
    %v661 = vld [vmem:[#allocation7 + $0x98] sm:$0xf]
    %v662 = vld [vmem:[#allocation7 + $0x9c] sm:$0xf]
    %v663 = vld [vmem:[#allocation7 + $0xa0] sm:$0xf]
    %v664 = vld [vmem:[#allocation7 + $0xa4] sm:$0xf]
    %v665 = vld [vmem:[#allocation7 + $0xa8] sm:$0xf]
    %v666 = vld [vmem:[#allocation7 + $0xac] sm:$0xf]
    %v667 = vld [vmem:[#allocation7 + $0xb0] sm:$0xf]
    %v668 = vld [vmem:[#allocation7 + $0xb4] sm:$0xf]
    %v669 = vld [vmem:[#allocation7 + $0xb8] sm:$0xf]
    %v670 = vld [vmem:[#allocation7 + $0xbc] sm:$0xf]
    %v671 = vld [vmem:[#allocation7 + $0xc0] sm:$0xf]
    %v672 = vld [vmem:[#allocation7 + $0xc4] sm:$0xf]
    %v673 = vld [vmem:[#allocation7 + $0xc8] sm:$0xf]
    %v674 = vld [vmem:[#allocation7 + $0xcc] sm:$0xf]
    %v675 = vld [vmem:[#allocation7 + $0xd0] sm:$0xf]
    %v676 = vld [vmem:[#allocation7 + $0xd4] sm:$0xf]
    %v677 = vld [vmem:[#allocation7 + $0xd8] sm:$0xf]
    %v678 = vld [vmem:[#allocation7 + $0xdc] sm:$0xf]
    %v679 = vld [vmem:[#allocation7 + $0xe0] sm:$0xf]
    %v680 = vld [vmem:[#allocation7 + $0xe4] sm:$0xf]
    %v681 = vld [vmem:[#allocation7 + $0xe8] sm:$0xf]
    %v682 = vld [vmem:[#allocation7 + $0xec] sm:$0xf]
    %v683 = vld [vmem:[#allocation7 + $0xf0] sm:$0xf]
    %v684 = vld [vmem:[#allocation7 + $0xf4] sm:$0xf]
    %v685 = vld [vmem:[#allocation7 + $0xf8] sm:$0xf]
    %v686 = vld [vmem:[#allocation7 + $0xfc] sm:$0xf]
    %v687 = vld [vmem:[#allocation7 + $0x100] sm:$0xf]
    %v688 = vld [vmem:[#allocation7 + $0x104] sm:$0xf]
    %v689 = vld [vmem:[#allocation7 + $0x108] sm:$0xf]
    %v690 = vld [vmem:[#allocation7 + $0x10c] sm:$0xf]
    %v691 = vld [vmem:[#allocation7 + $0x110] sm:$0xf]
    %v692 = vld [vmem:[#allocation7 + $0x114] sm:$0xf]
    %v693 = vld [vmem:[#allocation7 + $0x118] sm:$0xf]
    %v694 = vld [vmem:[#allocation7 + $0x11c] sm:$0xf]
    %v695 = vld [vmem:[#allocation7 + $0x120] sm:$0xf]
    %v696 = vld [vmem:[#allocation7 + $0x124] sm:$0xf]
    %v697 = vld [vmem:[#allocation7 + $0x128] sm:$0xf]
    %v698 = vld [vmem:[#allocation7 + $0x12c] sm:$0xf]
    %v699 = vld [vmem:[#allocation7 + $0x130] sm:$0xf]
    %v700 = vld [vmem:[#allocation7 + $0x134] sm:$0xf]
    %v701 = vld [vmem:[#allocation7 + $0x138] sm:$0xf]
    %v702 = vld [vmem:[#allocation7 + $0x13c] sm:$0xf]
    %v703 = vld [vmem:[#allocation7 + $0x140] sm:$0xf]
    %v704 = vld [vmem:[#allocation7 + $0x144] sm:$0xf]
    %v705 = vld [vmem:[#allocation7 + $0x148] sm:$0xf]
    %v706 = vld [vmem:[#allocation7 + $0x14c] sm:$0xf]
    %v707 = vld [vmem:[#allocation7 + $0x150] sm:$0xf]
    %v708 = vld [vmem:[#allocation7 + $0x154] sm:$0xf]
    %v709 = vld [vmem:[#allocation7 + $0x158] sm:$0xf]
    %v710 = vld [vmem:[#allocation7 + $0x15c] sm:$0xf]
    %v711 = vld [vmem:[#allocation7 + $0x160] sm:$0xf]
    %v712 = vld [vmem:[#allocation7 + $0x164] sm:$0xf]
    %v713 = vld [vmem:[#allocation7 + $0x168] sm:$0xf]
    %v714 = vld [vmem:[#allocation7 + $0x16c] sm:$0xf]
    %v715 = vld [vmem:[#allocation7 + $0x170] sm:$0xf]
    %v716 = vld [vmem:[#allocation7 + $0x174] sm:$0xf]
    %v717 = vld [vmem:[#allocation7 + $0x178] sm:$0xf]
    %v718 = vld [vmem:[#allocation7 + $0x17c] sm:$0xf]
    %v719 = vld [vmem:[#allocation7 + $0x180] sm:$0xf]
    %v720 = vld [vmem:[#allocation7 + $0x184] sm:$0xf]
    %v721 = vld [vmem:[%s5] sm:$0x1]
    %v723 = vperm.slane %v721, 0
    %v823 = vunpack.c.l.b16 %v623
    %v824 = vunpack.c.l.b16 %v624
    %v825 = vunpack.c.l.b16 %v625
    %v826 = vunpack.c.l.b16 %v626
    %v827 = vunpack.c.l.b16 %v627
    %v828 = vunpack.c.l.b16 %v628
    %v829 = vunpack.c.l.b16 %v629
    %v830 = vunpack.c.l.b16 %v630
    %v831 = vunpack.c.l.b16 %v631
    %v832 = vunpack.c.l.b16 %v632
    %v833 = vunpack.c.l.b16 %v633
    %v834 = vunpack.c.l.b16 %v634
    %v835 = vunpack.c.l.b16 %v635
    %v836 = vunpack.c.l.b16 %v636
    %v837 = vunpack.c.l.b16 %v637
    %v838 = vunpack.c.l.b16 %v638
    %v839 = vunpack.c.l.b16 %v639
    %v840 = vunpack.c.l.b16 %v640
    %v841 = vunpack.c.l.b16 %v641
    %v842 = vunpack.c.l.b16 %v642
    %v843 = vunpack.c.l.b16 %v643
    %v844 = vunpack.c.l.b16 %v644
    %v845 = vunpack.c.l.b16 %v645
    %v846 = vunpack.c.l.b16 %v646
    %v847 = vunpack.c.l.b16 %v647
    %v848 = vunpack.c.l.b16 %v648
    %v849 = vunpack.c.l.b16 %v649
    %v850 = vunpack.c.l.b16 %v650
    %v851 = vunpack.c.l.b16 %v651
    %v852 = vunpack.c.l.b16 %v652
    %v853 = vunpack.c.l.b16 %v653
    %v854 = vunpack.c.l.b16 %v654
    %v855 = vunpack.c.l.b16 %v655
    %v856 = vunpack.c.l.b16 %v656
    %v857 = vunpack.c.l.b16 %v657
    %v858 = vunpack.c.l.b16 %v658
    %v859 = vunpack.c.l.b16 %v659
    %v860 = vunpack.c.l.b16 %v660
    %v861 = vunpack.c.l.b16 %v661
    %v862 = vunpack.c.l.b16 %v662
    %v863 = vunpack.c.l.b16 %v663
    %v864 = vunpack.c.l.b16 %v664
    %v865 = vunpack.c.l.b16 %v665
    %v866 = vunpack.c.l.b16 %v666
    %v867 = vunpack.c.l.b16 %v667
    %v868 = vunpack.c.l.b16 %v668
    %v869 = vunpack.c.l.b16 %v669
    %v870 = vunpack.c.l.b16 %v670
    %v871 = vunpack.c.l.b16 %v671
    %v872 = vunpack.c.l.b16 %v672
    %v873 = vunpack.c.l.b16 %v673
    %v874 = vunpack.c.l.b16 %v674
    %v875 = vunpack.c.l.b16 %v675
    %v876 = vunpack.c.l.b16 %v676
    %v877 = vunpack.c.l.b16 %v677
    %v878 = vunpack.c.l.b16 %v678
    %v879 = vunpack.c.l.b16 %v679
    %v880 = vunpack.c.l.b16 %v680
    %v881 = vunpack.c.l.b16 %v681
    %v882 = vunpack.c.l.b16 %v682
    %v883 = vunpack.c.l.b16 %v683
    %v884 = vunpack.c.l.b16 %v684
    %v885 = vunpack.c.l.b16 %v685
    %v886 = vunpack.c.l.b16 %v686
    %v887 = vunpack.c.l.b16 %v687
    %v888 = vunpack.c.l.b16 %v688
    %v889 = vunpack.c.l.b16 %v689
    %v890 = vunpack.c.l.b16 %v690
    %v891 = vunpack.c.l.b16 %v691
    %v892 = vunpack.c.l.b16 %v692
    %v893 = vunpack.c.l.b16 %v693
    %v894 = vunpack.c.l.b16 %v694
    %v895 = vunpack.c.l.b16 %v695
    %v896 = vunpack.c.l.b16 %v696
    %v897 = vunpack.c.l.b16 %v697
    %v898 = vunpack.c.l.b16 %v698
    %v899 = vunpack.c.l.b16 %v699
    %v900 = vunpack.c.l.b16 %v700
    %v901 = vunpack.c.l.b16 %v701
    %v902 = vunpack.c.l.b16 %v702
    %v903 = vunpack.c.l.b16 %v703
    %v904 = vunpack.c.l.b16 %v704
    %v905 = vunpack.c.l.b16 %v705
    %v906 = vunpack.c.l.b16 %v706
    %v907 = vunpack.c.l.b16 %v707
    %v908 = vunpack.c.l.b16 %v708
    %v909 = vunpack.c.l.b16 %v709
    %v910 = vunpack.c.l.b16 %v710
    %v911 = vunpack.c.l.b16 %v711
    %v912 = vunpack.c.l.b16 %v712
    %v913 = vunpack.c.l.b16 %v713
    %v914 = vunpack.c.l.b16 %v714
    %v915 = vunpack.c.l.b16 %v715
    %v916 = vunpack.c.l.b16 %v716
    %v917 = vunpack.c.l.b16 %v717
    %v918 = vunpack.c.l.b16 %v718
    %v919 = vunpack.c.l.b16 %v719
    %v920 = vunpack.c.l.b16 %v720
    %v921 = vpack.c.b16 %v824, %v823
    %v922 = vpack.c.b16 %v826, %v825
    %v923 = vpack.c.b16 %v828, %v827
    %v924 = vpack.c.b16 %v830, %v829
    %v925 = vpack.c.b16 %v832, %v831
    %v926 = vpack.c.b16 %v834, %v833
    %v927 = vpack.c.b16 %v836, %v835
    %v928 = vpack.c.b16 %v838, %v837
    %v929 = vpack.c.b16 %v840, %v839
    %v930 = vpack.c.b16 %v842, %v841
    %v931 = vpack.c.b16 %v844, %v843
    %v932 = vpack.c.b16 %v846, %v845
    %v933 = vpack.c.b16 %v848, %v847
    %v934 = vpack.c.b16 %v850, %v849
    %v935 = vpack.c.b16 %v852, %v851
    %v936 = vpack.c.b16 %v854, %v853
    %v937 = vpack.c.b16 %v856, %v855
    %v938 = vpack.c.b16 %v858, %v857
    %v939 = vpack.c.b16 %v860, %v859
    %v940 = vpack.c.b16 %v862, %v861
    %v941 = vpack.c.b16 %v864, %v863
    %v942 = vpack.c.b16 %v866, %v865
    %v943 = vpack.c.b16 %v868, %v867
    %v944 = vpack.c.b16 %v870, %v869
    %v945 = vpack.c.b16 %v872, %v871
    %v946 = vpack.c.b16 %v874, %v873
    %v947 = vpack.c.b16 %v876, %v875
    %v948 = vpack.c.b16 %v878, %v877
    %v949 = vpack.c.b16 %v880, %v879
    %v950 = vpack.c.b16 %v882, %v881
    %v951 = vpack.c.b16 %v884, %v883
    %v952 = vpack.c.b16 %v886, %v885
    %v953 = vpack.c.b16 %v888, %v887
    %v954 = vpack.c.b16 %v890, %v889
    %v955 = vpack.c.b16 %v892, %v891
    %v956 = vpack.c.b16 %v894, %v893
    %v957 = vpack.c.b16 %v896, %v895
    %v958 = vpack.c.b16 %v898, %v897
    %v959 = vpack.c.b16 %v900, %v899
    %v960 = vpack.c.b16 %v902, %v901
    %v961 = vpack.c.b16 %v904, %v903
    %v962 = vpack.c.b16 %v906, %v905
    %v963 = vpack.c.b16 %v908, %v907
    %v964 = vpack.c.b16 %v910, %v909
    %v965 = vpack.c.b16 %v912, %v911
    %v966 = vpack.c.b16 %v914, %v913
    %v967 = vpack.c.b16 %v916, %v915
    %v968 = vpack.c.b16 %v918, %v917
    %v969 = vpack.c.b16 %v920, %v919
    %v1020 = vsel %vm528, %v131, 0
    %1022 = vmatpush.bf16.msra.mxu0 %v928
    %1023 = vmatpush.bf16.msra.mxu0 %v927
    %1024 = vmatpush.bf16.msra.mxu0 %v926
    %1025 = vmatpush.bf16.msra.mxu0 %v925
    %1026 = vmatpush.bf16.msra.mxu0 %v924
    %1027 = vmatpush.bf16.msra.mxu0 %v923
    %1028 = vmatpush.bf16.msra.mxu0 %v922
    %1029 = vmatpush.bf16.msra.mxu0 %v921
    %1030 = vmatmul.bf16.gmra.mxu0 %v125
    %v1031 = vpop.f32.mrf.mxu0
    %v1032 = vadd.f32 %v723, %v1031
    %v1033 = vpop.f32.mrf.mxu0
    %1034 = vdwg.mxu0
    %1035 = vmatpush.bf16.msra.mxu0 %v936
    %1036 = vmatpush.bf16.msra.mxu0 %v935
    %1037 = vmatpush.bf16.msra.mxu0 %v934
    %1038 = vmatpush.bf16.msra.mxu0 %v933
    %1039 = vmatpush.bf16.msra.mxu0 %v932
    %1040 = vmatpush.bf16.msra.mxu0 %v931
    %1041 = vmatpush.bf16.msra.mxu0 %v930
    %1042 = vmatpush.bf16.msra.mxu0 %v929
    %1043 = vmatmul.bf16.gmra.mxu0 %v126
    %v1044 = vpop.f32.mrf.mxu0
    %v1045 = vadd.f32 %v1032, %v1044
    %v1046 = vpop.f32.mrf.mxu0
    %1047 = vdwg.mxu0
    %1048 = vmatpush.bf16.msra.mxu0 %v944
    %1049 = vmatpush.bf16.msra.mxu0 %v943
    %1050 = vmatpush.bf16.msra.mxu0 %v942
    %1051 = vmatpush.bf16.msra.mxu0 %v941
    %1052 = vmatpush.bf16.msra.mxu0 %v940
    %1053 = vmatpush.bf16.msra.mxu0 %v939
    %1054 = vmatpush.bf16.msra.mxu0 %v938
    %1055 = vmatpush.bf16.msra.mxu0 %v937
    %1056 = vmatmul.bf16.gmra.mxu0 %v127
    %v1057 = vpop.f32.mrf.mxu0
    %v1058 = vadd.f32 %v1045, %v1057
    %v1059 = vpop.f32.mrf.mxu0
    %1060 = vdwg.mxu0
    %1061 = vmatpush.bf16.msra.mxu0 %v952
    %1062 = vmatpush.bf16.msra.mxu0 %v951
    %1063 = vmatpush.bf16.msra.mxu0 %v950
    %1064 = vmatpush.bf16.msra.mxu0 %v949
    %1065 = vmatpush.bf16.msra.mxu0 %v948
    %1066 = vmatpush.bf16.msra.mxu0 %v947
    %1067 = vmatpush.bf16.msra.mxu0 %v946
    %1068 = vmatpush.bf16.msra.mxu0 %v945
    %1069 = vmatmul.bf16.gmra.mxu0 %v128
    %v1070 = vpop.f32.mrf.mxu0
    %v1071 = vadd.f32 %v1058, %v1070
    %v1072 = vpop.f32.mrf.mxu0
    %1073 = vdwg.mxu0
    %1074 = vmatpush.bf16.msra.mxu0 %v960
    %1075 = vmatpush.bf16.msra.mxu0 %v959
    %1076 = vmatpush.bf16.msra.mxu0 %v958
    %1077 = vmatpush.bf16.msra.mxu0 %v957
    %1078 = vmatpush.bf16.msra.mxu0 %v956
    %1079 = vmatpush.bf16.msra.mxu0 %v955
    %1080 = vmatpush.bf16.msra.mxu0 %v954
    %1081 = vmatpush.bf16.msra.mxu0 %v953
    %1082 = vmatmul.bf16.gmra.mxu0 %v129
    %v1083 = vpop.f32.mrf.mxu0
    %v1084 = vadd.f32 %v1071, %v1083
    %v1085 = vpop.f32.mrf.mxu0
    %1086 = vdwg.mxu0
    %1087 = vmatpush.bf16.msra.mxu0 %v968
    %1088 = vmatpush.bf16.msra.mxu0 %v967
    %1089 = vmatpush.bf16.msra.mxu0 %v966
    %1090 = vmatpush.bf16.msra.mxu0 %v965
    %1091 = vmatpush.bf16.msra.mxu0 %v964
    %1092 = vmatpush.bf16.msra.mxu0 %v963
    %1093 = vmatpush.bf16.msra.mxu0 %v962
    %1094 = vmatpush.bf16.msra.mxu0 %v961
    %1095 = vmatmul.bf16.gmra.mxu0 %v130
    %v1096 = vpop.f32.mrf.mxu0
    %v1097 = vadd.f32 %v1084, %v1096
    %v1098 = vpop.f32.mrf.mxu0
    %1099 = vdwg.mxu0
    %1100 = vmatpush.bf16.msra.mxu0 0
    %1101 = vmatpush.bf16.msra.mxu0 0
    %1102 = vmatpush.bf16.msra.mxu0 0
    %1103 = vmatpush.bf16.msra.mxu0 0
    %1104 = vmatpush.bf16.msra.mxu0 0
    %1105 = vmatpush.bf16.msra.mxu0 0
    %1106 = vmatpush.bf16.msra.mxu0 0
    %1107 = vmatpush.bf16.msra.mxu0 %v969
    %1108 = vmatmul.bf16.gmra.mxu0 %v1020
    %v1109 = vpop.f32.mrf.mxu0
    %v1110 = vadd.f32 %v1097, %v1109
    %v1111 = vpop.f32.mrf.mxu0
    %1112 = vdwg.mxu0
    %v1113 = vld [vmem:[#allocation9] sm:$0xf]
    %v1114 = vld [vmem:[#allocation9 + $0x4] sm:$0xf]
    %v1115 = vld [vmem:[#allocation9 + $0x8] sm:$0xf]
    %v1116 = vld [vmem:[#allocation9 + $0xc] sm:$0xf]
    %v1117 = vld [vmem:[#allocation9 + $0x10] sm:$0xf]
    %v1118 = vld [vmem:[#allocation9 + $0x14] sm:$0xf]
    %v1119 = vld [vmem:[#allocation9 + $0x18] sm:$0xf]
    %v1120 = vld [vmem:[#allocation9 + $0x1c] sm:$0xf]
    %v1121 = vld [vmem:[#allocation9 + $0x20] sm:$0xf]
    %v1122 = vld [vmem:[#allocation9 + $0x24] sm:$0xf]
    %v1123 = vld [vmem:[#allocation9 + $0x28] sm:$0xf]
    %v1124 = vld [vmem:[#allocation9 + $0x2c] sm:$0xf]
    %v1125 = vld [vmem:[#allocation9 + $0x30] sm:$0xf]
    %v1126 = vld [vmem:[#allocation9 + $0x34] sm:$0xf]
    %v1127 = vld [vmem:[#allocation9 + $0x38] sm:$0xf]
    %v1128 = vld [vmem:[#allocation9 + $0x3c] sm:$0xf]
    %v1129 = vld [vmem:[#allocation9 + $0x40] sm:$0xf]
    %v1130 = vld [vmem:[#allocation9 + $0x44] sm:$0xf]
    %v1131 = vld [vmem:[#allocation9 + $0x48] sm:$0xf]
    %v1132 = vld [vmem:[#allocation9 + $0x4c] sm:$0xf]
    %v1133 = vld [vmem:[#allocation9 + $0x50] sm:$0xf]
    %v1134 = vld [vmem:[#allocation9 + $0x54] sm:$0xf]
    %v1135 = vld [vmem:[#allocation9 + $0x58] sm:$0xf]
    %v1136 = vld [vmem:[#allocation9 + $0x5c] sm:$0xf]
    %v1137 = vld [vmem:[#allocation9 + $0x60] sm:$0xf]
    %v1138 = vld [vmem:[#allocation9 + $0x64] sm:$0xf]
    %v1139 = vld [vmem:[#allocation9 + $0x68] sm:$0xf]
    %v1140 = vld [vmem:[#allocation9 + $0x6c] sm:$0xf]
    %v1141 = vld [vmem:[#allocation9 + $0x70] sm:$0xf]
    %v1142 = vld [vmem:[#allocation9 + $0x74] sm:$0xf]
    %v1143 = vld [vmem:[#allocation9 + $0x78] sm:$0xf]
    %v1144 = vld [vmem:[#allocation9 + $0x7c] sm:$0xf]
    %v1145 = vpack.c.bf16 %v620, %v620
    %v1146 = vpack.c.bf16 %v1110, %v1110
    %v1163 = vunpack.c.l.b16 %v1129
    %v1164 = vunpack.c.l.b16 %v1130
    %v1165 = vunpack.c.l.b16 %v1131
    %v1166 = vunpack.c.l.b16 %v1132
    %v1167 = vunpack.c.l.b16 %v1133
    %v1168 = vunpack.c.l.b16 %v1134
    %v1169 = vunpack.c.l.b16 %v1135
    %v1170 = vunpack.c.l.b16 %v1136
    %v1171 = vunpack.c.l.b16 %v1137
    %v1172 = vunpack.c.l.b16 %v1138
    %v1173 = vunpack.c.l.b16 %v1139
    %v1174 = vunpack.c.l.b16 %v1140
    %v1175 = vunpack.c.l.b16 %v1141
    %v1176 = vunpack.c.l.b16 %v1142
    %v1177 = vunpack.c.l.b16 %v1143
    %v1178 = vunpack.c.l.b16 %v1144
    %v1179 = vpack.c.b16 %v1164, %v1163
    %v1180 = vpack.c.b16 %v1166, %v1165
    %v1181 = vpack.c.b16 %v1168, %v1167
    %v1182 = vpack.c.b16 %v1170, %v1169
    %v1183 = vpack.c.b16 %v1172, %v1171
    %v1184 = vpack.c.b16 %v1174, %v1173
    %v1185 = vpack.c.b16 %v1176, %v1175
    %v1186 = vpack.c.b16 %v1178, %v1177
    %1195 = vmatpush.bf16.msra.mxu0 %v1186
    %1196 = vmatpush.bf16.msra.mxu0 %v1185
    %1197 = vmatpush.bf16.msra.mxu0 %v1184
    %1198 = vmatpush.bf16.msra.mxu0 %v1183
    %1199 = vmatpush.bf16.msra.mxu0 %v1182
    %1200 = vmatpush.bf16.msra.mxu0 %v1181
    %1201 = vmatpush.bf16.msra.mxu0 %v1180
    %1202 = vmatpush.bf16.msra.mxu0 %v1179
    %1203 = vmatmul.bf16.gmra.mxu0 %v1146
    %v1204 = vpop.f32.mrf.mxu0
    %v1205 = vadd.f32 0.0, %v1204
    %v1206 = vpop.f32.mrf.mxu0
    %1207 = vdwg.mxu0
    %v1224 = vunpack.c.l.b16 %v1113
    %v1225 = vunpack.c.l.b16 %v1114
    %v1226 = vunpack.c.l.b16 %v1115
    %v1227 = vunpack.c.l.b16 %v1116
    %v1228 = vunpack.c.l.b16 %v1117
    %v1229 = vunpack.c.l.b16 %v1118
    %v1230 = vunpack.c.l.b16 %v1119
    %v1231 = vunpack.c.l.b16 %v1120
    %v1232 = vunpack.c.l.b16 %v1121
    %v1233 = vunpack.c.l.b16 %v1122
    %v1234 = vunpack.c.l.b16 %v1123
    %v1235 = vunpack.c.l.b16 %v1124
    %v1236 = vunpack.c.l.b16 %v1125
    %v1237 = vunpack.c.l.b16 %v1126
    %v1238 = vunpack.c.l.b16 %v1127
    %v1239 = vunpack.c.l.b16 %v1128
    %v1240 = vpack.c.b16 %v1225, %v1224
    %v1241 = vpack.c.b16 %v1227, %v1226
    %v1242 = vpack.c.b16 %v1229, %v1228
    %v1243 = vpack.c.b16 %v1231, %v1230
    %v1244 = vpack.c.b16 %v1233, %v1232
    %v1245 = vpack.c.b16 %v1235, %v1234
    %v1246 = vpack.c.b16 %v1237, %v1236
    %v1247 = vpack.c.b16 %v1239, %v1238
    %1256 = vmatpush.bf16.msra.mxu0 %v1247
    %1257 = vmatpush.bf16.msra.mxu0 %v1246
    %1258 = vmatpush.bf16.msra.mxu0 %v1245
    %1259 = vmatpush.bf16.msra.mxu0 %v1244
    %1260 = vmatpush.bf16.msra.mxu0 %v1243
    %1261 = vmatpush.bf16.msra.mxu0 %v1242
    %1262 = vmatpush.bf16.msra.mxu0 %v1241
    %1263 = vmatpush.bf16.msra.mxu0 %v1240
    %1264 = vmatmul.bf16.gmra.mxu0 %v1145
    %v1265 = vpop.f32.mrf.mxu0
    %v1266 = vadd.f32 %v1205, %v1265
    %v1267 = vpop.f32.mrf.mxu0
    %1268 = vdwg.mxu0
    %v1269 = vld [vmem:[%s7] sm:$0x1]
    %v1271 = vperm.slane %v1269, 0
    %v1273 = vadd.f32 %v1266, %v1271
    %v1274 = vpack.c.bf16 %v1273, %v1273
    %1275 = vst [vmem:[%s8] sm:$0xf] %v1274
    // Predicated region
    $region54: #{multi_input_model.1} parent=1 // pred_check
      _
    $region55: #{multi_input_model.1} parent=1 // pred_check_branch
      %1277 = sbr.rel (0) target = $region57
    $region56: #{multi_input_model.1} parent=1 // pred_region
      _
    $region57: #{multi_input_model.1} parent=1 // pred_fallthru
      _
    // Predicated region
    $region58: #{multi_input_model.1} parent=1 // pred_check
      _
    $region59: #{multi_input_model.1} parent=1 // pred_check_branch
      %1279 = sbr.rel (0) target = $region61
    $region60: #{multi_input_model.1} parent=1 // pred_region
      _
    $region61: #{multi_input_model.1} parent=1 // pred_fallthru
      _
    %1280 = vsyncpa [#allocation3], 1
    %1281 = vsyncpa [#allocation5], 1
    %1282 = vsyncpa [#allocation8], 1

</llo_original>
